<compile_context>
chip_gen: v7x
topology: tpu7x:2x2x1
jax: 0.10.0
libtpu: 0.0.40
codegen_flags: <defaults>
</compile_context>

<pallas_src>
import functools

import jax
import jax.numpy as jnp
import numpy as np
from jax import lax
from jax.experimental import pallas as pl
from jax.experimental.pallas import tpu as pltpu


def _aug_kernel(x_ref, rsel_ref, csel_ref, o_ref, *, gh, n_groups):
    """One grid step = one (batch element, T*C chunk) slab.

    x_ref    : VMEM (1, tc_tile*H, W) input slab (channels stacked on rows)
    rsel_ref : VMEM (1, gh, gh)       per-batch block-diagonal row selector
    csel_ref : VMEM (1, W, W)         per-batch column selector (transposed)
    o_ref    : VMEM (1, tc_tile*H, W) output slab
    """
    rsel = rsel_ref[0]          # (gh, gh), resident across the chunk axis
    csel = csel_ref[0]          # (W, W),   resident across the chunk axis

    def body(gi, carry):
        base = pl.multiple_of(gi * gh, gh)
        xg = x_ref[0, pl.ds(base, gh), :]                      # (gh, W)
        # One-hot selections (exact in f32): columns, then rows.
        y = jnp.dot(xg, csel, preferred_element_type=jnp.float32)
        y = jnp.dot(rsel, y, preferred_element_type=jnp.float32)
        # Same op order as the module: (x + 0.5) * 255 - 0.5.  The selection
        # commutes exactly with the affine, so this is bit-identical.
        o_ref[0, pl.ds(base, gh), :] = (
            (y + 0.5) * 255.0 - 0.5).astype(o_ref.dtype)
        return carry

    lax.fori_loop(0, n_groups, body, 0, unroll=n_groups <= 8)


def _make_selectors(crop_offsets, *, h, w, g, pad, dtype=jnp.float32):
    """Per-batch one-hot crop selectors (tiny, built once in the wrapper).

    csel[b, c, j] = 1 iff c == clamp(j + ox_b - pad, 0, W-1)
    rsel[b, a, r] = 1 iff a//H == r//H and r%H == clamp(a%H + oy_b - pad, 0, H-1)
                    (i.e. kron(I_g, HxH row selector))
    """
    off = crop_offsets.astype(jnp.int32)
    dy = jnp.clip(off[:, 0], 0, 2 * pad) - pad                  # (B,)
    dx = jnp.clip(off[:, 1], 0, 2 * pad) - pad                  # (B,)

    c_ids = jnp.arange(w, dtype=jnp.int32)[None, :, None]       # (1, W, 1)
    j_ids = jnp.arange(w, dtype=jnp.int32)[None, None, :]       # (1, 1, W)
    src_c = jnp.clip(j_ids + dx[:, None, None], 0, w - 1)       # (B, 1, W)
    csel = (c_ids == src_c).astype(dtype)                       # (B, W, W)

    m = g * h
    a_ids = jnp.arange(m, dtype=jnp.int32)[None, :, None]       # (1, m, 1)
    r_ids = jnp.arange(m, dtype=jnp.int32)[None, None, :]       # (1, 1, m)
    same_blk = (a_ids // h) == (r_ids // h)                     # (1, m, m)
    src_r = jnp.clip((a_ids % h) + dy[:, None, None], 0, h - 1)  # (B, m, 1)
    rsel = (same_blk & ((r_ids % h) == src_r)).astype(dtype)    # (B, m, m)
    return rsel, csel


def _pick_tiles(tc, h, w, itemsize, *, max_block_bytes=4 << 20, max_sel_rows=128):
    """(tc_tile, g): DMA chunk size (channels) and row-matmul group size.

    tc_tile: largest divisor of T*C whose (tc_tile*H, W) slab stays under
             ~4 MiB (big blocks -> few grid steps; double-buffered in+out
             still well inside the 32 MiB scoped VMEM / v7x 64 MiB physical).
    g      : largest divisor of tc_tile with g*H <= 128 rows, so the row
             selector matmul stays small and fixed regardless of block size
             (keeps v5e HBM-bound instead of f32-MXU-bound).
    """
    if h % 8 != 0:
        # Chunked second-minor block dim must be a multiple of 8; fall back to
        # one full-slab block with a single (whole-slab) selector.
        return tc, tc
    tc_tile = 1
    for d in range(1, tc + 1):
        if tc % d == 0 and d * h * w * itemsize <= max_block_bytes:
            tc_tile = d
    g = 1
    cap = max(max_sel_rows, h)
    for d in range(1, tc_tile + 1):
        if tc_tile % d == 0 and d * h <= cap:
            g = d
    return tc_tile, g


def augmentation_forward(x, crop_offsets, *, pad=4):
    """Pallas implementation of Augmentation.forward (strong=False, consistent=True).

    x            : (B, T, C, H, W) float32, values roughly in [-0.5, 0.5]
    crop_offsets : (B, 2) int32 crop starts in [0, 2*pad]  (one per video,
                   shared across frames/channels == consistent crop)
    """
    if x.ndim == 4:
        # Mirrors the module's "STUPID RLLIB TEST USELESS - NOT AUGMENTING"
        # branch: it returns (X + 0.5) * 255 with NO crop and NO trailing -0.5
        # (intentionally inconsistent with the 5-D path, same as PyTorch).
        return (x + 0.5) * 255.0

    b, t, c, h, w = x.shape
    tc = t * c
    tc_tile, g = _pick_tiles(tc, h, w, x.dtype.itemsize)
    n_chunks = tc // tc_tile
    m = tc_tile * h
    gh = g * h
    n_groups = tc_tile // g

    rsel, csel = _make_selectors(crop_offsets, h=h, w=w, g=g, pad=pad,
                                 dtype=jnp.float32)

    # Channels stacked along the sublane axis -> free reshape (row-major).
    x2 = x.reshape(b, tc * h, w)

    kernel = functools.partial(_aug_kernel, gh=gh, n_groups=n_groups)
    out = pl.pallas_call(
        kernel,
        out_shape=jax.ShapeDtypeStruct((b, tc * h, w), x.dtype),
        grid=(b, n_chunks),
        in_specs=[
            pl.BlockSpec((1, m, w), lambda i, k: (i, k, 0)),
            # Per-batch selectors: block index constant along the chunk axis,
            # so each is DMA'd once per batch and stays resident in VMEM.
            pl.BlockSpec((1, gh, gh), lambda i, k: (i, 0, 0)),
            pl.BlockSpec((1, w, w), lambda i, k: (i, 0, 0)),
        ],
        out_specs=pl.BlockSpec((1, m, w), lambda i, k: (i, k, 0)),
        compiler_params=pltpu.CompilerParams(
            # Every (batch, chunk) step is independent (no scratch init, the
            # selectors are plain read-only inputs), so both axes can be
            # sharded across v7x's two TensorCores; no-op on v5e/v6e.
            dimension_semantics=("parallel", "parallel")),
    )(x2, rsel, csel)
    return out.reshape(b, t, c, h, w)


def _reference(x, crop_offsets, pad):
    """Pure-JAX reference of the same semantics (for correctness check)."""
    xs = (x + 0.5) * 255.0
    xp = jnp.pad(xs, ((0, 0), (0, 0), (0, 0), (pad, pad), (pad, pad)),
                 mode="edge")
    outs = []
    for bi in range(x.shape[0]):
        oy = int(crop_offsets[bi, 0])
        ox = int(crop_offsets[bi, 1])
        outs.append(xp[bi, :, :, oy:oy + x.shape[3], ox:ox + x.shape[4]])
    return jnp.stack(outs, axis=0) - 0.5


if __name__ == "__main__":
    # Small shapes consistent with the module: 16px crop, pad=4,
    # B=2 videos, T=3 frames, C=3 channels.
    B, T, C, H, W = 2, 3, 3, 16, 16
    PAD = 4

    key = jax.random.PRNGKey(0)
    kx, ko = jax.random.split(key)
    x = jax.random.uniform(kx, (B, T, C, H, W), jnp.float32) - 0.5
    # Deterministic "random" crop starts (the module samples these internally).
    crop_offsets = jax.random.randint(ko, (B, 2), 0, 2 * PAD + 1,
                                      dtype=jnp.int32)

    y = augmentation_forward(x, crop_offsets, pad=PAD)
    y = jax.block_until_ready(y)

    y_ref = _reference(x, crop_offsets, PAD)
    np.testing.assert_allclose(np.asarray(y), np.asarray(y_ref),
                               rtol=1e-5, atol=1e-3)

    print("KERNEL_OK")
</pallas_src>

<mosaic_0001>
module attributes {stable_mosaic.version = 11 : i64} {
  func.func @_aug_kernel(%arg0: i32, %arg1: i32, %arg2: memref<1x144x16xf32, #tpu.memory_space<vmem>>, %arg3: memref<1x48x48xf32, #tpu.memory_space<vmem>>, %arg4: memref<1x16x16xf32, #tpu.memory_space<vmem>>, %arg5: memref<1x144x16xf32, #tpu.memory_space<vmem>>) attributes {dimension_semantics = [#tpu.dimension_semantics<parallel>, #tpu.dimension_semantics<parallel>], iteration_bounds = array<i64: 2, 1>, scalar_prefetch = 0 : i64, scratch_operands = 0 : i64, tpu.core_type = #tpu.core_type<tc>, window_params = [{transform_indices = @transform_0, window_bounds = array<i64: 1, 144, 16>}, {transform_indices = @transform_1, window_bounds = array<i64: 1, 48, 48>}, {transform_indices = @transform_2, window_bounds = array<i64: 1, 16, 16>}, {transform_indices = @transform_3, window_bounds = array<i64: 1, 144, 16>}]} {
    %c0 = arith.constant 0 : index
    %c0_0 = arith.constant 0 : index
    %c0_1 = arith.constant 0 : index
    %0 = vector.load %arg3[%c0, %c0_0, %c0_1] : memref<1x48x48xf32, #tpu.memory_space<vmem>>, vector<1x48x48xf32>
    %1 = vector.shape_cast %0 : vector<1x48x48xf32> to vector<48x48xf32>
    %c0_2 = arith.constant 0 : index
    %c0_3 = arith.constant 0 : index
    %c0_4 = arith.constant 0 : index
    %2 = vector.load %arg4[%c0_2, %c0_3, %c0_4] : memref<1x16x16xf32, #tpu.memory_space<vmem>>, vector<1x16x16xf32>
    %3 = vector.shape_cast %2 : vector<1x16x16xf32> to vector<16x16xf32>
    %c0_i32 = arith.constant 0 : i32
    %c48_i32 = arith.constant 48 : i32
    %4 = arith.muli %c0_i32, %c48_i32 : i32
    %5 = tpu.assume_multiple %4, 48 : i32
    %c0_5 = arith.constant 0 : index
    %6 = arith.index_cast %5 : i32 to index
    %c0_6 = arith.constant 0 : index
    %7 = vector.load %arg2[%c0_5, %6, %c0_6] : memref<1x144x16xf32, #tpu.memory_space<vmem>>, vector<1x48x16xf32>
    %8 = vector.shape_cast %7 : vector<1x48x16xf32> to vector<48x16xf32>
    %cst = arith.constant dense<0.000000e+00> : vector<48x16xf32>
    %9 = tpu.matmul %8, %3, %cst {dimension_numbers = #tpu.dot_dimension_numbers<[1], [0], [0], [1], [0, 0, 1, 1], [], []>} : vector<48x16xf32>, vector<16x16xf32>, vector<48x16xf32> -> vector<48x16xf32>
    %cst_7 = arith.constant dense<0.000000e+00> : vector<48x16xf32>
    %10 = tpu.matmul %1, %9, %cst_7 {dimension_numbers = #tpu.dot_dimension_numbers<[1], [0], [0], [1], [0, 0, 1, 1], [], []>} : vector<48x48xf32>, vector<48x16xf32>, vector<48x16xf32> -> vector<48x16xf32>
    %cst_8 = arith.constant 5.000000e-01 : f32
    %11 = vector.broadcast %cst_8 : f32 to vector<48x16xf32>
    %12 = arith.addf %10, %11 : vector<48x16xf32>
    %cst_9 = arith.constant 2.550000e+02 : f32
    %13 = vector.broadcast %cst_9 : f32 to vector<48x16xf32>
    %14 = arith.mulf %12, %13 : vector<48x16xf32>
    %cst_10 = arith.constant 5.000000e-01 : f32
    %15 = vector.broadcast %cst_10 : f32 to vector<48x16xf32>
    %16 = arith.subf %14, %15 : vector<48x16xf32>
    %c0_11 = arith.constant 0 : index
    %17 = arith.index_cast %5 : i32 to index
    %c0_12 = arith.constant 0 : index
    %18 = vector.load %arg5[%c0_11, %17, %c0_12] : memref<1x144x16xf32, #tpu.memory_space<vmem>>, vector<1x48x16xf32>
    %19 = vector.shape_cast %18 : vector<1x48x16xf32> to vector<48x16xf32>
    %20 = vector.shape_cast %16 : vector<48x16xf32> to vector<1x48x16xf32>
    tpu.vector_store %arg5[%c0_11, %17, %c0_12], %20 {strides = array<i32>} : memref<1x144x16xf32, #tpu.memory_space<vmem>>, vector<1x48x16xf32>,
    %c1_i32 = arith.constant 1 : i32
    %c48_i32_13 = arith.constant 48 : i32
    %21 = arith.muli %c1_i32, %c48_i32_13 : i32
    %22 = tpu.assume_multiple %21, 48 : i32
    %c0_14 = arith.constant 0 : index
    %23 = arith.index_cast %22 : i32 to index
    %c0_15 = arith.constant 0 : index
    %24 = vector.load %arg2[%c0_14, %23, %c0_15] : memref<1x144x16xf32, #tpu.memory_space<vmem>>, vector<1x48x16xf32>
    %25 = vector.shape_cast %24 : vector<1x48x16xf32> to vector<48x16xf32>
    %cst_16 = arith.constant dense<0.000000e+00> : vector<48x16xf32>
    %26 = tpu.matmul %25, %3, %cst_16 {dimension_numbers = #tpu.dot_dimension_numbers<[1], [0], [0], [1], [0, 0, 1, 1], [], []>} : vector<48x16xf32>, vector<16x16xf32>, vector<48x16xf32> -> vector<48x16xf32>
    %cst_17 = arith.constant dense<0.000000e+00> : vector<48x16xf32>
    %27 = tpu.matmul %1, %26, %cst_17 {dimension_numbers = #tpu.dot_dimension_numbers<[1], [0], [0], [1], [0, 0, 1, 1], [], []>} : vector<48x48xf32>, vector<48x16xf32>, vector<48x16xf32> -> vector<48x16xf32>
    %cst_18 = arith.constant 5.000000e-01 : f32
    %28 = vector.broadcast %cst_18 : f32 to vector<48x16xf32>
    %29 = arith.addf %27, %28 : vector<48x16xf32>
    %cst_19 = arith.constant 2.550000e+02 : f32
    %30 = vector.broadcast %cst_19 : f32 to vector<48x16xf32>
    %31 = arith.mulf %29, %30 : vector<48x16xf32>
    %cst_20 = arith.constant 5.000000e-01 : f32
    %32 = vector.broadcast %cst_20 : f32 to vector<48x16xf32>
    %33 = arith.subf %31, %32 : vector<48x16xf32>
    %c0_21 = arith.constant 0 : index
    %34 = arith.index_cast %22 : i32 to index
    %c0_22 = arith.constant 0 : index
    %35 = vector.load %arg5[%c0_21, %34, %c0_22] : memref<1x144x16xf32, #tpu.memory_space<vmem>>, vector<1x48x16xf32>
    %36 = vector.shape_cast %35 : vector<1x48x16xf32> to vector<48x16xf32>
    %37 = vector.shape_cast %33 : vector<48x16xf32> to vector<1x48x16xf32>
    tpu.vector_store %arg5[%c0_21, %34, %c0_22], %37 {strides = array<i32>} : memref<1x144x16xf32, #tpu.memory_space<vmem>>, vector<1x48x16xf32>,
    %c2_i32 = arith.constant 2 : i32
    %c48_i32_23 = arith.constant 48 : i32
    %38 = arith.muli %c2_i32, %c48_i32_23 : i32
    %39 = tpu.assume_multiple %38, 48 : i32
    %c0_24 = arith.constant 0 : index
    %40 = arith.index_cast %39 : i32 to index
    %c0_25 = arith.constant 0 : index
    %41 = vector.load %arg2[%c0_24, %40, %c0_25] : memref<1x144x16xf32, #tpu.memory_space<vmem>>, vector<1x48x16xf32>
    %42 = vector.shape_cast %41 : vector<1x48x16xf32> to vector<48x16xf32>
    %cst_26 = arith.constant dense<0.000000e+00> : vector<48x16xf32>
    %43 = tpu.matmul %42, %3, %cst_26 {dimension_numbers = #tpu.dot_dimension_numbers<[1], [0], [0], [1], [0, 0, 1, 1], [], []>} : vector<48x16xf32>, vector<16x16xf32>, vector<48x16xf32> -> vector<48x16xf32>
    %cst_27 = arith.constant dense<0.000000e+00> : vector<48x16xf32>
    %44 = tpu.matmul %1, %43, %cst_27 {dimension_numbers = #tpu.dot_dimension_numbers<[1], [0], [0], [1], [0, 0, 1, 1], [], []>} : vector<48x48xf32>, vector<48x16xf32>, vector<48x16xf32> -> vector<48x16xf32>
    %cst_28 = arith.constant 5.000000e-01 : f32
    %45 = vector.broadcast %cst_28 : f32 to vector<48x16xf32>
    %46 = arith.addf %44, %45 : vector<48x16xf32>
    %cst_29 = arith.constant 2.550000e+02 : f32
    %47 = vector.broadcast %cst_29 : f32 to vector<48x16xf32>
    %48 = arith.mulf %46, %47 : vector<48x16xf32>
    %cst_30 = arith.constant 5.000000e-01 : f32
    %49 = vector.broadcast %cst_30 : f32 to vector<48x16xf32>
    %50 = arith.subf %48, %49 : vector<48x16xf32>
    %c0_31 = arith.constant 0 : index
    %51 = arith.index_cast %39 : i32 to index
    %c0_32 = arith.constant 0 : index
    %52 = vector.load %arg5[%c0_31, %51, %c0_32] : memref<1x144x16xf32, #tpu.memory_space<vmem>>, vector<1x48x16xf32>
    %53 = vector.shape_cast %52 : vector<1x48x16xf32> to vector<48x16xf32>
    %54 = vector.shape_cast %50 : vector<48x16xf32> to vector<1x48x16xf32>
    tpu.vector_store %arg5[%c0_31, %51, %c0_32], %54 {strides = array<i32>} : memref<1x144x16xf32, #tpu.memory_space<vmem>>, vector<1x48x16xf32>,
    %c3_i32 = arith.constant 3 : i32
    return
  }
  func.func @transform_0(%arg0: i32, %arg1: i32) -> (i32, i32, i32) {
    %c0_i32 = arith.constant 0 : i32
    %c0_i32_0 = arith.constant 0 : i32
    return %arg0, %arg1, %c0_i32 : i32, i32, i32
  }
  func.func @transform_1(%arg0: i32, %arg1: i32) -> (i32, i32, i32) {
    %c0_i32 = arith.constant 0 : i32
    %c0_i32_0 = arith.constant 0 : i32
    %c0_i32_1 = arith.constant 0 : i32
    return %arg0, %c0_i32, %c0_i32_0 : i32, i32, i32
  }
  func.func @transform_2(%arg0: i32, %arg1: i32) -> (i32, i32, i32) {
    %c0_i32 = arith.constant 0 : i32
    %c0_i32_0 = arith.constant 0 : i32
    %c0_i32_1 = arith.constant 0 : i32
    return %arg0, %c0_i32, %c0_i32_0 : i32, i32, i32
  }
  func.func @transform_3(%arg0: i32, %arg1: i32) -> (i32, i32, i32) {
    %c0_i32 = arith.constant 0 : i32
    %c0_i32_0 = arith.constant 0 : i32
    return %arg0, %arg1, %c0_i32 : i32, i32, i32
  }
}

</mosaic_0001>

<llo_original>
// kernel: tpu_custom_call.1
$region0: #{tpu_custom_call.1}
  #allocation0 [shape = 'u32[]', space=smem, size = 0x4, offset = 0x4, fixed_abs, tag = 'smem constant byte address 0x4 - core index']
  #allocation1 [shape = 'u32[144,128]{1,0:T(1,128)}', space=vmem, size = 0x12000, scoped, tag = 'internal scratch']
  %s0 = inlined_call_operand.vmem [shape: f32[2,144,16], index: 0, kind: input, shape index: {}]
  %s1 = inlined_call_operand.vmem [shape: f32[2,48,48], index: 1, kind: input, shape index: {}]
  %s2 = inlined_call_operand.vmem [shape: f32[2,16,16], index: 2, kind: input, shape index: {}]
  %s3 = inlined_call_operand.vmem [shape: f32[2,144,16], index: 3, kind: output, shape index: {}]
  %s4 = sld [smem:[#allocation0]]
  $region45: #{tpu_custom_call.1} parent=0
    _
  %s6 = ssub.s32 1, %s4
  %s7 = scalar_select 0, %s6, %s4
  loop: start=0, step=1, limit=4
  $region2: #{tpu_custom_call.1} parent=0 // loop_pre_header
    _
  $region3: #{tpu_custom_call.1} parent=0 // loop_header
    %s9 = sphi 0, %s13
    %p10 = scmp.ge.s32.totalorder %s9, 4
    %s16 = sphi 0, %s28
    %s17 = sphi 0, %s24
    %s18 = sphi 0, %s16
    %s19 = sphi 0, %s17
    %s20 = sphi 0, %s18
    %s21 = sphi 0, %s19
    %s33 = sphi 0, %s35
    %s36 = sphi 0, %s33
    %s37 = sphi 0, %s36
    %s53 = sphi 0, %s37
    %s59 = sphi 0, %s61
    %s62 = sphi 0, %s59
    %s63 = sphi 0, %s62
    %s79 = sphi 0, %s63
    %s85 = sphi 0, %s87
    %s88 = sphi 0, %s85
    %s89 = sphi 0, %s88
    %s105 = sphi 0, %s89
    %s113 = sphi 0, %s115
    %s116 = sphi 0, %s113
    %s117 = sphi 0, %s116
    %s133 = sphi 0, %s117
  $region4: #{tpu_custom_call.1} parent=0 // loop_header_branch
    %12 = sbr.rel (%p10) target = $region8
  $region5: #{tpu_custom_call.1} parent=0 // loop_body
    %s14 = ssub.s32 %s9, 1
    %s15 = ssub.s32 %s9, 2
    %s22 = sadd.s32 1, %s17
    %p23 = scmp.ge.s32.totalorder %s22, 1
    %s24 = scalar_select %p23, 0, %s22
    %s25 = sadd.s32 1, %s16
    %s26 = scalar_select %p23, %s25, %s16
    %p27 = scmp.ge.s32.totalorder %s26, 2
    %s28 = scalar_select %p27, 0, %s26
    %s29 = ssub.s32 %s16, %s28
    %s30 = ssub.s32 %s17, %s24
    %s31 = sor.u32 %s29, %s30
    %p32 = scmp.eq.s32.totalorder %s31, 0
    %s34 = sadd.s32 %s33, 1
    %s35 = scalar_select %p32, %s33, %s34
    %p38 = pneg %p32
    %p39 = scmp.eq.s32.totalorder %s9, 1
    %p40 = por %p38, %p39
    %p41 = scmp.ne.s32.totalorder %s33, %s36
    %p42 = scmp.eq.s32.totalorder %s9, 0
    %p43 = por %p41, %p42
    %p44 = scmp.ne.s32.totalorder %s33, %s36
    %p45 = scmp.eq.s32.totalorder %s14, 1
    %p46 = por %p44, %p45
    %p47 = scmp.ne.s32.totalorder %s36, %s37
    %p48 = scmp.eq.s32.totalorder %s14, 0
    %p49 = por %p47, %p48
    %p50 = scmp.ne.s32.totalorder %s36, %s37
    %p51 = scmp.eq.s32.totalorder %s15, 1
    %p52 = por %p50, %p51
    %p54 = scmp.ne.s32.totalorder %s37, %s53
    %p55 = scmp.eq.s32.totalorder %s15, 0
    %p56 = por %p54, %p55
    %s57 = ssub.s32 %s16, %s28
    %p58 = scmp.eq.s32.totalorder %s57, 0
    %s60 = sadd.s32 %s59, 1
    %s61 = scalar_select %p58, %s59, %s60
    %p64 = pneg %p58
    %p65 = scmp.eq.s32.totalorder %s9, 1
    %p66 = por %p64, %p65
    %p67 = scmp.ne.s32.totalorder %s59, %s62
    %p68 = scmp.eq.s32.totalorder %s9, 0
    %p69 = por %p67, %p68
    %p70 = scmp.ne.s32.totalorder %s59, %s62
    %p71 = scmp.eq.s32.totalorder %s14, 1
    %p72 = por %p70, %p71
    %p73 = scmp.ne.s32.totalorder %s62, %s63
    %p74 = scmp.eq.s32.totalorder %s14, 0
    %p75 = por %p73, %p74
    %p76 = scmp.ne.s32.totalorder %s62, %s63
    %p77 = scmp.eq.s32.totalorder %s15, 1
    %p78 = por %p76, %p77
    %p80 = scmp.ne.s32.totalorder %s63, %s79
    %p81 = scmp.eq.s32.totalorder %s15, 0
    %p82 = por %p80, %p81
    %s83 = ssub.s32 %s16, %s28
    %p84 = scmp.eq.s32.totalorder %s83, 0
    %s86 = sadd.s32 %s85, 1
    %s87 = scalar_select %p84, %s85, %s86
    %p90 = pneg %p84
    %p91 = scmp.eq.s32.totalorder %s9, 1
    %p92 = por %p90, %p91
    %p93 = scmp.ne.s32.totalorder %s85, %s88
    %p94 = scmp.eq.s32.totalorder %s9, 0
    %p95 = por %p93, %p94
    %p96 = scmp.ne.s32.totalorder %s85, %s88
    %p97 = scmp.eq.s32.totalorder %s14, 1
    %p98 = por %p96, %p97
    %p99 = scmp.ne.s32.totalorder %s88, %s89
    %p100 = scmp.eq.s32.totalorder %s14, 0
    %p101 = por %p99, %p100
    %p102 = scmp.ne.s32.totalorder %s88, %s89
    %p103 = scmp.eq.s32.totalorder %s15, 1
    %p104 = por %p102, %p103
    %p106 = scmp.ne.s32.totalorder %s89, %s105
    %p107 = scmp.eq.s32.totalorder %s15, 0
    %p108 = por %p106, %p107
    %s109 = ssub.s32 %s16, %s28
    %s110 = ssub.s32 %s17, %s24
    %s111 = sor.u32 %s109, %s110
    %p112 = scmp.eq.s32.totalorder %s111, 0
    %s114 = sadd.s32 %s113, 1
    %s115 = scalar_select %p112, %s113, %s114
    %p118 = pneg %p112
    %p119 = scmp.eq.s32.totalorder %s9, 1
    %p120 = por %p118, %p119
    %p121 = scmp.ne.s32.totalorder %s113, %s116
    %p122 = scmp.eq.s32.totalorder %s9, 0
    %p123 = por %p121, %p122
    %p124 = scmp.ne.s32.totalorder %s113, %s116
    %p125 = scmp.eq.s32.totalorder %s14, 1
    %p126 = por %p124, %p125
    %p127 = scmp.ne.s32.totalorder %s116, %s117
    %p128 = scmp.eq.s32.totalorder %s14, 0
    %p129 = por %p127, %p128
    %p130 = scmp.ne.s32.totalorder %s116, %s117
    %p131 = scmp.eq.s32.totalorder %s15, 1
    %p132 = por %p130, %p131
    %p134 = scmp.ne.s32.totalorder %s117, %s133
    %p135 = scmp.eq.s32.totalorder %s15, 0
    %p136 = por %p134, %p135
    %p137 = scmp.le.s32.totalorder 1, %s9
    %p138 = scmp.lt.s32.totalorder %s9, 3
    %p139 = pnand %p137, %p138
    %p140 = pneg %p139
    // Predicated region
    $region9: #{tpu_custom_call.1} parent=5 // pred_check
      _
    $region10: #{tpu_custom_call.1} parent=5 // pred_check_branch
      %142 = sbr.rel (%p139) target = $region12
    $region11: #{tpu_custom_call.1} parent=5 // pred_region
      %s143 = ssub.s32 %s9, 1
    $region12: #{tpu_custom_call.1} parent=5 // pred_fallthru
      _
    %p144 = scmp.lt.s32.totalorder %s9, 2
    // Predicated region
    $region13: #{tpu_custom_call.1} parent=5 // pred_check
      %p145 = pneg %p144
    $region14: #{tpu_custom_call.1} parent=5 // pred_check_branch
      %147 = sbr.rel (%p145) target = $region16
    $region15: #{tpu_custom_call.1} parent=5 // pred_region
      // Predicated region
      $region17: #{tpu_custom_call.1} parent=15 // pred_check
        %p148 = pneg %p43
      $region18: #{tpu_custom_call.1} parent=15 // pred_check_branch
        %150 = sbr.rel (%p148) target = $region20
      $region19: #{tpu_custom_call.1} parent=15 // pred_region
        %s151 = smul.u32 18, %s17
        %p152 = scmp.lt.s32.totalorder %s16, 1
        %s153 = scalar_select %p152, %s16, 1
        %p154 = scmp.lt.s32.totalorder %s151, 17
        %s155 = scalar_select %p154, %s151, 17
        %s156 = smul.addr %s153, 18
        %s157 = sadd.s32 %s155, %s156
        %s158 = smul.addr %s157, 8
        %s159 = scalar_lea.vmem %s0, %s158
        %s160 = smul.u32 18, %s17
      $region20: #{tpu_custom_call.1} parent=15 // pred_fallthru
        _
      // Predicated region
      $region21: #{tpu_custom_call.1} parent=15 // pred_check
        %p161 = pneg %p69
      $region22: #{tpu_custom_call.1} parent=15 // pred_check_branch
        %163 = sbr.rel (%p161) target = $region24
      $region23: #{tpu_custom_call.1} parent=15 // pred_region
        %p164 = scmp.lt.s32.totalorder %s16, 1
        %s165 = scalar_select %p164, %s16, 1
        %s166 = smul.addr %s165, 6
        %s167 = smul.addr %s166, 8
        %s168 = scalar_lea.vmem %s1, %s167
      $region24: #{tpu_custom_call.1} parent=15 // pred_fallthru
        _
      // Predicated region
      $region25: #{tpu_custom_call.1} parent=15 // pred_check
        %p169 = pneg %p95
      $region26: #{tpu_custom_call.1} parent=15 // pred_check_branch
        %171 = sbr.rel (%p169) target = $region28
      $region27: #{tpu_custom_call.1} parent=15 // pred_region
        %p172 = scmp.lt.s32.totalorder %s16, 1
        %s173 = scalar_select %p172, %s16, 1
        %s174 = smul.addr %s173, 2
        %s175 = smul.addr %s174, 8
        %s176 = scalar_lea.vmem %s2, %s175
      $region28: #{tpu_custom_call.1} parent=15 // pred_fallthru
        _
    $region16: #{tpu_custom_call.1} parent=5 // pred_fallthru
      _
    %p177 = scmp.le.s32.totalorder 1, %s9
    %p178 = scmp.lt.s32.totalorder %s9, 3
    %p179 = pnand %p177, %p178
    %p180 = pneg %p179
    // Predicated region
    $region29: #{tpu_custom_call.1} parent=5 // pred_check
      _
    $region30: #{tpu_custom_call.1} parent=5 // pred_check_branch
      %182 = sbr.rel (%p179) target = $region32
    $region31: #{tpu_custom_call.1} parent=5 // pred_region
      %s183 = ssub.s32 %s9, 1
      %s184 = smul.u32 18, %s19
      %p185 = scmp.lt.s32.totalorder %s18, 1
      %s186 = scalar_select %p185, %s18, 1
      %p187 = scmp.lt.s32.totalorder %s184, 17
      %s188 = scalar_select %p187, %s184, 17
      %s189 = smul.addr %s186, 18
      %s190 = sadd.s32 %s188, %s189
      %s191 = smul.addr %s190, 8
      %s192 = scalar_lea.vmem %s0, %s191
      %p193 = pneg %p49
      %p194 = pneg %p46
      %p195 = scmp.lt.s32.totalorder %s18, 1
      %s196 = scalar_select %p195, %s18, 1
      %s197 = smul.addr %s196, 6
      %s198 = smul.addr %s197, 8
      %s199 = scalar_lea.vmem %s1, %s198
      %p200 = pneg %p75
      %p201 = pneg %p72
      %p202 = scmp.lt.s32.totalorder %s18, 1
      %s203 = scalar_select %p202, %s18, 1
      %s204 = smul.addr %s203, 2
      %s205 = smul.addr %s204, 8
      %s206 = scalar_lea.vmem %s2, %s205
      %p207 = pneg %p101
      %p208 = pneg %p98
      %p209 = pneg %p129
      %p210 = pneg %p126
      %s211 = smul.u32 18, %s19
      %p212 = scmp.lt.s32.totalorder %s18, 1
      %s213 = scalar_select %p212, %s18, 1
      %p214 = scmp.lt.s32.totalorder %s211, 17
      %s215 = scalar_select %p214, %s211, 17
      %s216 = smul.addr %s213, 18
      %s217 = sadd.s32 %s215, %s216
      %s218 = smul.addr %s217, 8
      %s219 = scalar_lea.vmem %s3, %s218
      %s220 = smul.u32 18, %s19
      %p221 = scmp.lt.s32.totalorder %s18, 1
      %s222 = scalar_select %p221, %s18, 1
      %p223 = scmp.lt.s32.totalorder %s220, 17
      %s224 = scalar_select %p223, %s220, 17
      %s225 = smul.addr %s222, 18
      %s226 = sadd.s32 %s224, %s225
      %s227 = smul.addr %s226, 8
      %s228 = scalar_lea.vmem %s0, %s227
      %s229 = smul.u32 18, %s19
      %p230 = scmp.lt.s32.totalorder %s18, 1
      %s231 = scalar_select %p230, %s18, 1
      %s232 = smul.addr %s231, 6
      %s233 = smul.addr %s232, 8
      %s234 = scalar_lea.vmem %s1, %s233
      %p235 = scmp.lt.s32.totalorder %s18, 1
      %s236 = scalar_select %p235, %s18, 1
      %s237 = smul.addr %s236, 2
      %s238 = smul.addr %s237, 8
      %s239 = scalar_lea.vmem %s2, %s238
      %s240 = smul.u32 18, %s19
      %p241 = scmp.lt.s32.totalorder %s18, 1
      %s242 = scalar_select %p241, %s18, 1
      %p243 = scmp.lt.s32.totalorder %s240, 17
      %s244 = scalar_select %p243, %s240, 17
      %s245 = smul.addr %s242, 18
      %s246 = sadd.s32 %s244, %s245
      %s247 = smul.addr %s246, 8
      %s248 = scalar_lea.vmem %s3, %s247
      %s249 = smul.u32 18, %s19
      %v250 = vld [vmem:[%s234] sm:$0xff]
      %v251 = vld [vmem:[%s234 + $0x8] sm:$0xff]
      %v252 = vld [vmem:[%s234 + $0x10] sm:$0xff]
      %v253 = vld [vmem:[%s234 + $0x18] sm:$0xff]
      %v254 = vld [vmem:[%s234 + $0x20] sm:$0xff]
      %v255 = vld [vmem:[%s234 + $0x28] sm:$0xff]
      %v256 = vld [vmem:[%s239] sm:$0xff]
      %v257 = vld [vmem:[%s239 + $0x8] sm:$0xff]
      %v258 = vld [vmem:[%s228] sm:$0xff]
      %v259 = vld [vmem:[%s228 + $0x8] sm:$0xff]
      %v260 = vld [vmem:[%s228 + $0x10] sm:$0xff]
      %v261 = vld [vmem:[%s228 + $0x18] sm:$0xff]
      %v262 = vld [vmem:[%s228 + $0x20] sm:$0xff]
      %v263 = vld [vmem:[%s228 + $0x28] sm:$0xff]
      %vm264 = vcmask 130048
      %v266 = vsel %vm264, %v258, 0
      %v269 = vsel %vm264, %v259, 0
      %v272 = vsel %vm264, %v260, 0
      %v275 = vsel %vm264, %v261, 0
      %v278 = vsel %vm264, %v262, 0
      %v281 = vsel %vm264, %v263, 0
      %283 = vmatprep.subr.mxu0 0.0
      %284 = vmatpush1.msra.mxu0 %v256
      %285 = vmatprep.subr.mxu0 0.0
      %286 = vmatpush1.msra.mxu0 %v257
      %287 = vmatprep.subr.mxu0 0.0
      %288 = vmatpush1.msra.mxu0 0.0
      %289 = vmatprep.subr.mxu0 0.0
      %290 = vmatpush1.msra.mxu0 0.0
      %291 = vmatprep.subr.mxu0 0.0
      %292 = vmatpush1.msra.mxu0 0.0
      %293 = vmatprep.subr.mxu0 0.0
      %294 = vmatpush1.msra.mxu0 0.0
      %295 = vmatprep.subr.mxu0 0.0
      %296 = vmatpush1.msra.mxu0 0.0
      %297 = vmatprep.subr.mxu0 0.0
      %298 = vmatpush1.msra.mxu0 0.0
      %299 = vmatprep.subr.mxu0 0.0
      %300 = vmatpush1.msra.mxu0 0.0
      %301 = vmatprep.subr.mxu0 0.0
      %302 = vmatpush1.msra.mxu0 0.0
      %303 = vmatprep.subr.mxu0 0.0
      %304 = vmatpush1.msra.mxu0 0.0
      %305 = vmatprep.subr.mxu0 0.0
      %306 = vmatpush1.msra.mxu0 0.0
      %307 = vmatprep.subr.mxu0 0.0
      %308 = vmatpush1.msra.mxu0 0.0
      %309 = vmatprep.subr.mxu0 0.0
      %310 = vmatpush1.msra.mxu0 0.0
      %311 = vmatprep.subr.mxu0 0.0
      %312 = vmatpush1.msra.mxu0 0.0
      %313 = vmatprep.subr.mxu0 0.0
      %314 = vmatpush1.msra.mxu0 0.0
      %315 = vmatprep.subr.mxu0 0.0
      %316 = vmatpush1.msra.mxu0 0.0
      %317 = vmatprep.subr.mxu0 0.0
      %318 = vmatpush1.msra.mxu0 0.0
      %319 = vmatprep.subr.mxu0 0.0
      %320 = vmatpush1.msra.mxu0 0.0
      %321 = vmatprep.subr.mxu0 0.0
      %322 = vmatpush1.msra.mxu0 0.0
      %323 = vmatprep.subr.mxu0 0.0
      %324 = vmatpush1.msra.mxu0 0.0
      %325 = vmatprep.subr.mxu0 0.0
      %326 = vmatpush1.msra.mxu0 0.0
      %327 = vmatprep.subr.mxu0 0.0
      %328 = vmatpush1.msra.mxu0 0.0
      %329 = vmatprep.subr.mxu0 0.0
      %330 = vmatpush1.msra.mxu0 0.0
      %331 = vmatprep.subr.mxu0 0.0
      %332 = vmatpush1.msra.mxu0 0.0
      %333 = vmatprep.subr.mxu0 0.0
      %334 = vmatpush1.msra.mxu0 0.0
      %335 = vmatprep.subr.mxu0 0.0
      %336 = vmatpush1.msra.mxu0 0.0
      %337 = vmatprep.subr.mxu0 0.0
      %338 = vmatpush1.msra.mxu0 0.0
      %339 = vmatprep.subr.mxu0 0.0
      %340 = vmatpush1.msra.mxu0 0.0
      %341 = vmatprep.subr.mxu0 0.0
      %342 = vmatpush1.msra.mxu0 0.0
      %343 = vmatprep.subr.mxu0 0.0
      %344 = vmatpush1.msra.mxu0 0.0
      %345 = vmatprep.subr.mxu0 0.0
      %346 = vmatpush1.msra.mxu0 0.0
      %347 = vmatprep.mubr.f32.mxu0 0.0
      %348 = vmatmul.mubr.f32.gmra.mrb[0].mxu0 %v266
      %v349 = vpop.f32.mrb[0].mxu0
      %v350 = vadd.f32 0.0, %v349
      %v351 = vpop.f32.mrb[0].mxu0
      %352 = vmatprep.mubr.f32.mxu0 0.0
      %353 = vmatmul.mubr.f32.gmra.mrb[0].mxu0 %v269
      %v354 = vpop.f32.mrb[0].mxu0
      %v355 = vadd.f32 0.0, %v354
      %v356 = vpop.f32.mrb[0].mxu0
      %357 = vmatprep.mubr.f32.mxu0 0.0
      %358 = vmatmul.mubr.f32.gmra.mrb[0].mxu0 %v272
      %v359 = vpop.f32.mrb[0].mxu0
      %v360 = vadd.f32 0.0, %v359
      %v361 = vpop.f32.mrb[0].mxu0
      %362 = vmatprep.mubr.f32.mxu0 0.0
      %363 = vmatmul.mubr.f32.gmra.mrb[0].mxu0 %v275
      %v364 = vpop.f32.mrb[0].mxu0
      %v365 = vadd.f32 0.0, %v364
      %v366 = vpop.f32.mrb[0].mxu0
      %367 = vmatprep.mubr.f32.mxu0 0.0
      %368 = vmatmul.mubr.f32.gmra.mrb[0].mxu0 %v278
      %v369 = vpop.f32.mrb[0].mxu0
      %v370 = vadd.f32 0.0, %v369
      %v371 = vpop.f32.mrb[0].mxu0
      %372 = vmatprep.mubr.f32.mxu0 0.0
      %373 = vmatmul.mubr.f32.gmra.mrb[0].mxu0 %v281
      %v374 = vpop.f32.mrb[0].mxu0
      %v375 = vadd.f32 0.0, %v374
      %v376 = vpop.f32.mrb[0].mxu0
      %377 = vdwg.mxu0
      %vm378 = vcmask 392192
      %v380 = vsel %vm378, %v250, 0
      %v383 = vsel %vm378, %v251, 0
      %v386 = vsel %vm378, %v252, 0
      %v389 = vsel %vm378, %v253, 0
      %v392 = vsel %vm378, %v254, 0
      %v395 = vsel %vm378, %v255, 0
      %397 = vmatprep.subr.mxu0 0.0
      %398 = vmatpush1.msra.mxu0 %v350
      %399 = vmatprep.subr.mxu0 0.0
      %400 = vmatpush1.msra.mxu0 %v355
      %401 = vmatprep.subr.mxu0 0.0
      %402 = vmatpush1.msra.mxu0 %v360
      %403 = vmatprep.subr.mxu0 0.0
      %404 = vmatpush1.msra.mxu0 %v365
      %405 = vmatprep.subr.mxu0 0.0
      %406 = vmatpush1.msra.mxu0 %v370
      %407 = vmatprep.subr.mxu0 0.0
      %408 = vmatpush1.msra.mxu0 %v375
      %409 = vmatprep.subr.mxu0 0.0
      %410 = vmatpush1.msra.mxu0 0.0
      %411 = vmatprep.subr.mxu0 0.0
      %412 = vmatpush1.msra.mxu0 0.0
      %413 = vmatprep.subr.mxu0 0.0
      %414 = vmatpush1.msra.mxu0 0.0
      %415 = vmatprep.subr.mxu0 0.0
      %416 = vmatpush1.msra.mxu0 0.0
      %417 = vmatprep.subr.mxu0 0.0
      %418 = vmatpush1.msra.mxu0 0.0
      %419 = vmatprep.subr.mxu0 0.0
      %420 = vmatpush1.msra.mxu0 0.0
      %421 = vmatprep.subr.mxu0 0.0
      %422 = vmatpush1.msra.mxu0 0.0
      %423 = vmatprep.subr.mxu0 0.0
      %424 = vmatpush1.msra.mxu0 0.0
      %425 = vmatprep.subr.mxu0 0.0
      %426 = vmatpush1.msra.mxu0 0.0
      %427 = vmatprep.subr.mxu0 0.0
      %428 = vmatpush1.msra.mxu0 0.0
      %429 = vmatprep.subr.mxu0 0.0
      %430 = vmatpush1.msra.mxu0 0.0
      %431 = vmatprep.subr.mxu0 0.0
      %432 = vmatpush1.msra.mxu0 0.0
      %433 = vmatprep.subr.mxu0 0.0
      %434 = vmatpush1.msra.mxu0 0.0
      %435 = vmatprep.subr.mxu0 0.0
      %436 = vmatpush1.msra.mxu0 0.0
      %437 = vmatprep.subr.mxu0 0.0
      %438 = vmatpush1.msra.mxu0 0.0
      %439 = vmatprep.subr.mxu0 0.0
      %440 = vmatpush1.msra.mxu0 0.0
      %441 = vmatprep.subr.mxu0 0.0
      %442 = vmatpush1.msra.mxu0 0.0
      %443 = vmatprep.subr.mxu0 0.0
      %444 = vmatpush1.msra.mxu0 0.0
      %445 = vmatprep.subr.mxu0 0.0
      %446 = vmatpush1.msra.mxu0 0.0
      %447 = vmatprep.subr.mxu0 0.0
      %448 = vmatpush1.msra.mxu0 0.0
      %449 = vmatprep.subr.mxu0 0.0
      %450 = vmatpush1.msra.mxu0 0.0
      %451 = vmatprep.subr.mxu0 0.0
      %452 = vmatpush1.msra.mxu0 0.0
      %453 = vmatprep.subr.mxu0 0.0
      %454 = vmatpush1.msra.mxu0 0.0
      %455 = vmatprep.subr.mxu0 0.0
      %456 = vmatpush1.msra.mxu0 0.0
      %457 = vmatprep.subr.mxu0 0.0
      %458 = vmatpush1.msra.mxu0 0.0
      %459 = vmatprep.subr.mxu0 0.0
      %460 = vmatpush1.msra.mxu0 0.0
      %461 = vmatprep.mubr.f32.mxu0 0.0
      %462 = vmatmul.mubr.f32.gmra.mrb[0].mxu0 %v380
      %v463 = vpop.f32.mrb[0].mxu0
      %v464 = vadd.f32 0.5, %v463
      %v465 = vpop.f32.mrb[0].mxu0
      %466 = vmatprep.mubr.f32.mxu0 0.0
      %467 = vmatmul.mubr.f32.gmra.mrb[0].mxu0 %v383
      %v468 = vpop.f32.mrb[0].mxu0
      %v469 = vadd.f32 0.5, %v468
      %v470 = vpop.f32.mrb[0].mxu0
      %471 = vmatprep.mubr.f32.mxu0 0.0
      %472 = vmatmul.mubr.f32.gmra.mrb[0].mxu0 %v386
      %v473 = vpop.f32.mrb[0].mxu0
      %v474 = vadd.f32 0.5, %v473
      %v475 = vpop.f32.mrb[0].mxu0
      %476 = vmatprep.mubr.f32.mxu0 0.0
      %477 = vmatmul.mubr.f32.gmra.mrb[0].mxu0 %v389
      %v478 = vpop.f32.mrb[0].mxu0
      %v479 = vadd.f32 0.5, %v478
      %v480 = vpop.f32.mrb[0].mxu0
      %481 = vmatprep.mubr.f32.mxu0 0.0
      %482 = vmatmul.mubr.f32.gmra.mrb[0].mxu0 %v392
      %v483 = vpop.f32.mrb[0].mxu0
      %v484 = vadd.f32 0.5, %v483
      %v485 = vpop.f32.mrb[0].mxu0
      %486 = vmatprep.mubr.f32.mxu0 0.0
      %487 = vmatmul.mubr.f32.gmra.mrb[0].mxu0 %v395
      %v488 = vpop.f32.mrb[0].mxu0
      %v489 = vadd.f32 0.5, %v488
      %v490 = vpop.f32.mrb[0].mxu0
      %491 = vdwg.mxu0
      %v492 = vmul.f32 %v464, 255.0
      %v493 = vmul.f32 %v469, 255.0
      %v494 = vmul.f32 %v474, 255.0
      %v495 = vmul.f32 %v479, 255.0
      %v496 = vmul.f32 %v484, 255.0
      %v497 = vmul.f32 %v489, 255.0
      %v498 = vsub.f32 %v492, 0.5
      %v499 = vsub.f32 %v493, 0.5
      %v500 = vsub.f32 %v494, 0.5
      %v501 = vsub.f32 %v495, 0.5
      %v502 = vsub.f32 %v496, 0.5
      %v503 = vsub.f32 %v497, 0.5
      %504 = vst.msk [vmem:[%s248] sm:$0xff] %vm264, %v498
      %505 = vst.msk [vmem:[%s248 + $0x8] sm:$0xff] %vm264, %v499
      %506 = vst.msk [vmem:[%s248 + $0x10] sm:$0xff] %vm264, %v500
      %507 = vst.msk [vmem:[%s248 + $0x18] sm:$0xff] %vm264, %v501
      %508 = vst.msk [vmem:[%s248 + $0x20] sm:$0xff] %vm264, %v502
      %509 = vst.msk [vmem:[%s248 + $0x28] sm:$0xff] %vm264, %v503
      %s510 = scalar_lea.vmem %s228, 48
      %v511 = vld [vmem:[%s510] sm:$0xff]
      %v512 = vld [vmem:[%s510 + $0x8] sm:$0xff]
      %v513 = vld [vmem:[%s510 + $0x10] sm:$0xff]
      %v514 = vld [vmem:[%s510 + $0x18] sm:$0xff]
      %v515 = vld [vmem:[%s510 + $0x20] sm:$0xff]
      %v516 = vld [vmem:[%s510 + $0x28] sm:$0xff]
      %v518 = vsel %vm264, %v511, 0
      %v521 = vsel %vm264, %v512, 0
      %v524 = vsel %vm264, %v513, 0
      %v527 = vsel %vm264, %v514, 0
      %v530 = vsel %vm264, %v515, 0
      %v533 = vsel %vm264, %v516, 0
      %535 = vmatprep.subr.mxu0 0.0
      %536 = vmatpush1.msra.mxu0 %v256
      %537 = vmatprep.subr.mxu0 0.0
      %538 = vmatpush1.msra.mxu0 %v257
      %539 = vmatprep.subr.mxu0 0.0
      %540 = vmatpush1.msra.mxu0 0.0
      %541 = vmatprep.subr.mxu0 0.0
      %542 = vmatpush1.msra.mxu0 0.0
      %543 = vmatprep.subr.mxu0 0.0
      %544 = vmatpush1.msra.mxu0 0.0
      %545 = vmatprep.subr.mxu0 0.0
      %546 = vmatpush1.msra.mxu0 0.0
      %547 = vmatprep.subr.mxu0 0.0
      %548 = vmatpush1.msra.mxu0 0.0
      %549 = vmatprep.subr.mxu0 0.0
      %550 = vmatpush1.msra.mxu0 0.0
      %551 = vmatprep.subr.mxu0 0.0
      %552 = vmatpush1.msra.mxu0 0.0
      %553 = vmatprep.subr.mxu0 0.0
      %554 = vmatpush1.msra.mxu0 0.0
      %555 = vmatprep.subr.mxu0 0.0
      %556 = vmatpush1.msra.mxu0 0.0
      %557 = vmatprep.subr.mxu0 0.0
      %558 = vmatpush1.msra.mxu0 0.0
      %559 = vmatprep.subr.mxu0 0.0
      %560 = vmatpush1.msra.mxu0 0.0
      %561 = vmatprep.subr.mxu0 0.0
      %562 = vmatpush1.msra.mxu0 0.0
      %563 = vmatprep.subr.mxu0 0.0
      %564 = vmatpush1.msra.mxu0 0.0
      %565 = vmatprep.subr.mxu0 0.0
      %566 = vmatpush1.msra.mxu0 0.0
      %567 = vmatprep.subr.mxu0 0.0
      %568 = vmatpush1.msra.mxu0 0.0
      %569 = vmatprep.subr.mxu0 0.0
      %570 = vmatpush1.msra.mxu0 0.0
      %571 = vmatprep.subr.mxu0 0.0
      %572 = vmatpush1.msra.mxu0 0.0
      %573 = vmatprep.subr.mxu0 0.0
      %574 = vmatpush1.msra.mxu0 0.0
      %575 = vmatprep.subr.mxu0 0.0
      %576 = vmatpush1.msra.mxu0 0.0
      %577 = vmatprep.subr.mxu0 0.0
      %578 = vmatpush1.msra.mxu0 0.0
      %579 = vmatprep.subr.mxu0 0.0
      %580 = vmatpush1.msra.mxu0 0.0
      %581 = vmatprep.subr.mxu0 0.0
      %582 = vmatpush1.msra.mxu0 0.0
      %583 = vmatprep.subr.mxu0 0.0
      %584 = vmatpush1.msra.mxu0 0.0
      %585 = vmatprep.subr.mxu0 0.0
      %586 = vmatpush1.msra.mxu0 0.0
      %587 = vmatprep.subr.mxu0 0.0
      %588 = vmatpush1.msra.mxu0 0.0
      %589 = vmatprep.subr.mxu0 0.0
      %590 = vmatpush1.msra.mxu0 0.0
      %591 = vmatprep.subr.mxu0 0.0
      %592 = vmatpush1.msra.mxu0 0.0
      %593 = vmatprep.subr.mxu0 0.0
      %594 = vmatpush1.msra.mxu0 0.0
      %595 = vmatprep.subr.mxu0 0.0
      %596 = vmatpush1.msra.mxu0 0.0
      %597 = vmatprep.subr.mxu0 0.0
      %598 = vmatpush1.msra.mxu0 0.0
      %599 = vmatprep.mubr.f32.mxu0 0.0
      %600 = vmatmul.mubr.f32.gmra.mrb[0].mxu0 %v518
      %v601 = vpop.f32.mrb[0].mxu0
      %v602 = vadd.f32 0.0, %v601
      %v603 = vpop.f32.mrb[0].mxu0
      %604 = vmatprep.mubr.f32.mxu0 0.0
      %605 = vmatmul.mubr.f32.gmra.mrb[0].mxu0 %v521
      %v606 = vpop.f32.mrb[0].mxu0
      %v607 = vadd.f32 0.0, %v606
      %v608 = vpop.f32.mrb[0].mxu0
      %609 = vmatprep.mubr.f32.mxu0 0.0
      %610 = vmatmul.mubr.f32.gmra.mrb[0].mxu0 %v524
      %v611 = vpop.f32.mrb[0].mxu0
      %v612 = vadd.f32 0.0, %v611
      %v613 = vpop.f32.mrb[0].mxu0
      %614 = vmatprep.mubr.f32.mxu0 0.0
      %615 = vmatmul.mubr.f32.gmra.mrb[0].mxu0 %v527
      %v616 = vpop.f32.mrb[0].mxu0
      %v617 = vadd.f32 0.0, %v616
      %v618 = vpop.f32.mrb[0].mxu0
      %619 = vmatprep.mubr.f32.mxu0 0.0
      %620 = vmatmul.mubr.f32.gmra.mrb[0].mxu0 %v530
      %v621 = vpop.f32.mrb[0].mxu0
      %v622 = vadd.f32 0.0, %v621
      %v623 = vpop.f32.mrb[0].mxu0
      %624 = vmatprep.mubr.f32.mxu0 0.0
      %625 = vmatmul.mubr.f32.gmra.mrb[0].mxu0 %v533
      %v626 = vpop.f32.mrb[0].mxu0
      %v627 = vadd.f32 0.0, %v626
      %v628 = vpop.f32.mrb[0].mxu0
      %629 = vdwg.mxu0
      %630 = vmatprep.subr.mxu0 0.0
      %631 = vmatpush1.msra.mxu0 %v602
      %632 = vmatprep.subr.mxu0 0.0
      %633 = vmatpush1.msra.mxu0 %v607
      %634 = vmatprep.subr.mxu0 0.0
      %635 = vmatpush1.msra.mxu0 %v612
      %636 = vmatprep.subr.mxu0 0.0
      %637 = vmatpush1.msra.mxu0 %v617
      %638 = vmatprep.subr.mxu0 0.0
      %639 = vmatpush1.msra.mxu0 %v622
      %640 = vmatprep.subr.mxu0 0.0
      %641 = vmatpush1.msra.mxu0 %v627
      %642 = vmatprep.subr.mxu0 0.0
      %643 = vmatpush1.msra.mxu0 0.0
      %644 = vmatprep.subr.mxu0 0.0
      %645 = vmatpush1.msra.mxu0 0.0
      %646 = vmatprep.subr.mxu0 0.0
      %647 = vmatpush1.msra.mxu0 0.0
      %648 = vmatprep.subr.mxu0 0.0
      %649 = vmatpush1.msra.mxu0 0.0
      %650 = vmatprep.subr.mxu0 0.0
      %651 = vmatpush1.msra.mxu0 0.0
      %652 = vmatprep.subr.mxu0 0.0
      %653 = vmatpush1.msra.mxu0 0.0
      %654 = vmatprep.subr.mxu0 0.0
      %655 = vmatpush1.msra.mxu0 0.0
      %656 = vmatprep.subr.mxu0 0.0
      %657 = vmatpush1.msra.mxu0 0.0
      %658 = vmatprep.subr.mxu0 0.0
      %659 = vmatpush1.msra.mxu0 0.0
      %660 = vmatprep.subr.mxu0 0.0
      %661 = vmatpush1.msra.mxu0 0.0
      %662 = vmatprep.subr.mxu0 0.0
      %663 = vmatpush1.msra.mxu0 0.0
      %664 = vmatprep.subr.mxu0 0.0
      %665 = vmatpush1.msra.mxu0 0.0
      %666 = vmatprep.subr.mxu0 0.0
      %667 = vmatpush1.msra.mxu0 0.0
      %668 = vmatprep.subr.mxu0 0.0
      %669 = vmatpush1.msra.mxu0 0.0
      %670 = vmatprep.subr.mxu0 0.0
      %671 = vmatpush1.msra.mxu0 0.0
      %672 = vmatprep.subr.mxu0 0.0
      %673 = vmatpush1.msra.mxu0 0.0
      %674 = vmatprep.subr.mxu0 0.0
      %675 = vmatpush1.msra.mxu0 0.0
      %676 = vmatprep.subr.mxu0 0.0
      %677 = vmatpush1.msra.mxu0 0.0
      %678 = vmatprep.subr.mxu0 0.0
      %679 = vmatpush1.msra.mxu0 0.0
      %680 = vmatprep.subr.mxu0 0.0
      %681 = vmatpush1.msra.mxu0 0.0
      %682 = vmatprep.subr.mxu0 0.0
      %683 = vmatpush1.msra.mxu0 0.0
      %684 = vmatprep.subr.mxu0 0.0
      %685 = vmatpush1.msra.mxu0 0.0
      %686 = vmatprep.subr.mxu0 0.0
      %687 = vmatpush1.msra.mxu0 0.0
      %688 = vmatprep.subr.mxu0 0.0
      %689 = vmatpush1.msra.mxu0 0.0
      %690 = vmatprep.subr.mxu0 0.0
      %691 = vmatpush1.msra.mxu0 0.0
      %692 = vmatprep.subr.mxu0 0.0
      %693 = vmatpush1.msra.mxu0 0.0
      %694 = vmatprep.mubr.f32.mxu0 0.0
      %695 = vmatmul.mubr.f32.gmra.mrb[0].mxu0 %v380
      %v696 = vpop.f32.mrb[0].mxu0
      %v697 = vadd.f32 0.5, %v696
      %v698 = vpop.f32.mrb[0].mxu0
      %699 = vmatprep.mubr.f32.mxu0 0.0
      %700 = vmatmul.mubr.f32.gmra.mrb[0].mxu0 %v383
      %v701 = vpop.f32.mrb[0].mxu0
      %v702 = vadd.f32 0.5, %v701
      %v703 = vpop.f32.mrb[0].mxu0
      %704 = vmatprep.mubr.f32.mxu0 0.0
      %705 = vmatmul.mubr.f32.gmra.mrb[0].mxu0 %v386
      %v706 = vpop.f32.mrb[0].mxu0
      %v707 = vadd.f32 0.5, %v706
      %v708 = vpop.f32.mrb[0].mxu0
      %709 = vmatprep.mubr.f32.mxu0 0.0
      %710 = vmatmul.mubr.f32.gmra.mrb[0].mxu0 %v389
      %v711 = vpop.f32.mrb[0].mxu0
      %v712 = vadd.f32 0.5, %v711
      %v713 = vpop.f32.mrb[0].mxu0
      %714 = vmatprep.mubr.f32.mxu0 0.0
      %715 = vmatmul.mubr.f32.gmra.mrb[0].mxu0 %v392
      %v716 = vpop.f32.mrb[0].mxu0
      %v717 = vadd.f32 0.5, %v716
      %v718 = vpop.f32.mrb[0].mxu0
      %719 = vmatprep.mubr.f32.mxu0 0.0
      %720 = vmatmul.mubr.f32.gmra.mrb[0].mxu0 %v395
      %v721 = vpop.f32.mrb[0].mxu0
      %v722 = vadd.f32 0.5, %v721
      %v723 = vpop.f32.mrb[0].mxu0
      %724 = vdwg.mxu0
      %v725 = vmul.f32 %v697, 255.0
      %v726 = vmul.f32 %v702, 255.0
      %v727 = vmul.f32 %v707, 255.0
      %v728 = vmul.f32 %v712, 255.0
      %v729 = vmul.f32 %v717, 255.0
      %v730 = vmul.f32 %v722, 255.0
      %v731 = vsub.f32 %v725, 0.5
      %v732 = vsub.f32 %v726, 0.5
      %v733 = vsub.f32 %v727, 0.5
      %v734 = vsub.f32 %v728, 0.5
      %v735 = vsub.f32 %v729, 0.5
      %v736 = vsub.f32 %v730, 0.5
      %s737 = scalar_lea.vmem %s248, 48
      %738 = vst.msk [vmem:[%s737] sm:$0xff] %vm264, %v731
      %739 = vst.msk [vmem:[%s737 + $0x8] sm:$0xff] %vm264, %v732
      %740 = vst.msk [vmem:[%s737 + $0x10] sm:$0xff] %vm264, %v733
      %741 = vst.msk [vmem:[%s737 + $0x18] sm:$0xff] %vm264, %v734
      %742 = vst.msk [vmem:[%s737 + $0x20] sm:$0xff] %vm264, %v735
      %743 = vst.msk [vmem:[%s737 + $0x28] sm:$0xff] %vm264, %v736
      %s744 = scalar_lea.vmem %s228, 96
      %v745 = vld [vmem:[%s744] sm:$0xff]
      %v746 = vld [vmem:[%s744 + $0x8] sm:$0xff]
      %v747 = vld [vmem:[%s744 + $0x10] sm:$0xff]
      %v748 = vld [vmem:[%s744 + $0x18] sm:$0xff]
      %v749 = vld [vmem:[%s744 + $0x20] sm:$0xff]
      %v750 = vld [vmem:[%s744 + $0x28] sm:$0xff]
      %v752 = vsel %vm264, %v745, 0
      %v755 = vsel %vm264, %v746, 0
      %v758 = vsel %vm264, %v747, 0
      %v761 = vsel %vm264, %v748, 0
      %v764 = vsel %vm264, %v749, 0
      %v767 = vsel %vm264, %v750, 0
      %769 = vmatprep.subr.mxu0 0.0
      %770 = vmatpush1.msra.mxu0 %v256
      %771 = vmatprep.subr.mxu0 0.0
      %772 = vmatpush1.msra.mxu0 %v257
      %773 = vmatprep.subr.mxu0 0.0
      %774 = vmatpush1.msra.mxu0 0.0
      %775 = vmatprep.subr.mxu0 0.0
      %776 = vmatpush1.msra.mxu0 0.0
      %777 = vmatprep.subr.mxu0 0.0
      %778 = vmatpush1.msra.mxu0 0.0
      %779 = vmatprep.subr.mxu0 0.0
      %780 = vmatpush1.msra.mxu0 0.0
      %781 = vmatprep.subr.mxu0 0.0
      %782 = vmatpush1.msra.mxu0 0.0
      %783 = vmatprep.subr.mxu0 0.0
      %784 = vmatpush1.msra.mxu0 0.0
      %785 = vmatprep.subr.mxu0 0.0
      %786 = vmatpush1.msra.mxu0 0.0
      %787 = vmatprep.subr.mxu0 0.0
      %788 = vmatpush1.msra.mxu0 0.0
      %789 = vmatprep.subr.mxu0 0.0
      %790 = vmatpush1.msra.mxu0 0.0
      %791 = vmatprep.subr.mxu0 0.0
      %792 = vmatpush1.msra.mxu0 0.0
      %793 = vmatprep.subr.mxu0 0.0
      %794 = vmatpush1.msra.mxu0 0.0
      %795 = vmatprep.subr.mxu0 0.0
      %796 = vmatpush1.msra.mxu0 0.0
      %797 = vmatprep.subr.mxu0 0.0
      %798 = vmatpush1.msra.mxu0 0.0
      %799 = vmatprep.subr.mxu0 0.0
      %800 = vmatpush1.msra.mxu0 0.0
      %801 = vmatprep.subr.mxu0 0.0
      %802 = vmatpush1.msra.mxu0 0.0
      %803 = vmatprep.subr.mxu0 0.0
      %804 = vmatpush1.msra.mxu0 0.0
      %805 = vmatprep.subr.mxu0 0.0
      %806 = vmatpush1.msra.mxu0 0.0
      %807 = vmatprep.subr.mxu0 0.0
      %808 = vmatpush1.msra.mxu0 0.0
      %809 = vmatprep.subr.mxu0 0.0
      %810 = vmatpush1.msra.mxu0 0.0
      %811 = vmatprep.subr.mxu0 0.0
      %812 = vmatpush1.msra.mxu0 0.0
      %813 = vmatprep.subr.mxu0 0.0
      %814 = vmatpush1.msra.mxu0 0.0
      %815 = vmatprep.subr.mxu0 0.0
      %816 = vmatpush1.msra.mxu0 0.0
      %817 = vmatprep.subr.mxu0 0.0
      %818 = vmatpush1.msra.mxu0 0.0
      %819 = vmatprep.subr.mxu0 0.0
      %820 = vmatpush1.msra.mxu0 0.0
      %821 = vmatprep.subr.mxu0 0.0
      %822 = vmatpush1.msra.mxu0 0.0
      %823 = vmatprep.subr.mxu0 0.0
      %824 = vmatpush1.msra.mxu0 0.0
      %825 = vmatprep.subr.mxu0 0.0
      %826 = vmatpush1.msra.mxu0 0.0
      %827 = vmatprep.subr.mxu0 0.0
      %828 = vmatpush1.msra.mxu0 0.0
      %829 = vmatprep.subr.mxu0 0.0
      %830 = vmatpush1.msra.mxu0 0.0
      %831 = vmatprep.subr.mxu0 0.0
      %832 = vmatpush1.msra.mxu0 0.0
      %833 = vmatprep.mubr.f32.mxu0 0.0
      %834 = vmatmul.mubr.f32.gmra.mrb[0].mxu0 %v752
      %v835 = vpop.f32.mrb[0].mxu0
      %v836 = vadd.f32 0.0, %v835
      %v837 = vpop.f32.mrb[0].mxu0
      %838 = vmatprep.mubr.f32.mxu0 0.0
      %839 = vmatmul.mubr.f32.gmra.mrb[0].mxu0 %v755
      %v840 = vpop.f32.mrb[0].mxu0
      %v841 = vadd.f32 0.0, %v840
      %v842 = vpop.f32.mrb[0].mxu0
      %843 = vmatprep.mubr.f32.mxu0 0.0
      %844 = vmatmul.mubr.f32.gmra.mrb[0].mxu0 %v758
      %v845 = vpop.f32.mrb[0].mxu0
      %v846 = vadd.f32 0.0, %v845
      %v847 = vpop.f32.mrb[0].mxu0
      %848 = vmatprep.mubr.f32.mxu0 0.0
      %849 = vmatmul.mubr.f32.gmra.mrb[0].mxu0 %v761
      %v850 = vpop.f32.mrb[0].mxu0
      %v851 = vadd.f32 0.0, %v850
      %v852 = vpop.f32.mrb[0].mxu0
      %853 = vmatprep.mubr.f32.mxu0 0.0
      %854 = vmatmul.mubr.f32.gmra.mrb[0].mxu0 %v764
      %v855 = vpop.f32.mrb[0].mxu0
      %v856 = vadd.f32 0.0, %v855
      %v857 = vpop.f32.mrb[0].mxu0
      %858 = vmatprep.mubr.f32.mxu0 0.0
      %859 = vmatmul.mubr.f32.gmra.mrb[0].mxu0 %v767
      %v860 = vpop.f32.mrb[0].mxu0
      %v861 = vadd.f32 0.0, %v860
      %v862 = vpop.f32.mrb[0].mxu0
      %863 = vdwg.mxu0
      %864 = vmatprep.subr.mxu0 0.0
      %865 = vmatpush1.msra.mxu0 %v836
      %866 = vmatprep.subr.mxu0 0.0
      %867 = vmatpush1.msra.mxu0 %v841
      %868 = vmatprep.subr.mxu0 0.0
      %869 = vmatpush1.msra.mxu0 %v846
      %870 = vmatprep.subr.mxu0 0.0
      %871 = vmatpush1.msra.mxu0 %v851
      %872 = vmatprep.subr.mxu0 0.0
      %873 = vmatpush1.msra.mxu0 %v856
      %874 = vmatprep.subr.mxu0 0.0
      %875 = vmatpush1.msra.mxu0 %v861
      %876 = vmatprep.subr.mxu0 0.0
      %877 = vmatpush1.msra.mxu0 0.0
      %878 = vmatprep.subr.mxu0 0.0
      %879 = vmatpush1.msra.mxu0 0.0
      %880 = vmatprep.subr.mxu0 0.0
      %881 = vmatpush1.msra.mxu0 0.0
      %882 = vmatprep.subr.mxu0 0.0
      %883 = vmatpush1.msra.mxu0 0.0
      %884 = vmatprep.subr.mxu0 0.0
      %885 = vmatpush1.msra.mxu0 0.0
      %886 = vmatprep.subr.mxu0 0.0
      %887 = vmatpush1.msra.mxu0 0.0
      %888 = vmatprep.subr.mxu0 0.0
      %889 = vmatpush1.msra.mxu0 0.0
      %890 = vmatprep.subr.mxu0 0.0
      %891 = vmatpush1.msra.mxu0 0.0
      %892 = vmatprep.subr.mxu0 0.0
      %893 = vmatpush1.msra.mxu0 0.0
      %894 = vmatprep.subr.mxu0 0.0
      %895 = vmatpush1.msra.mxu0 0.0
      %896 = vmatprep.subr.mxu0 0.0
      %897 = vmatpush1.msra.mxu0 0.0
      %898 = vmatprep.subr.mxu0 0.0
      %899 = vmatpush1.msra.mxu0 0.0
      %900 = vmatprep.subr.mxu0 0.0
      %901 = vmatpush1.msra.mxu0 0.0
      %902 = vmatprep.subr.mxu0 0.0
      %903 = vmatpush1.msra.mxu0 0.0
      %904 = vmatprep.subr.mxu0 0.0
      %905 = vmatpush1.msra.mxu0 0.0
      %906 = vmatprep.subr.mxu0 0.0
      %907 = vmatpush1.msra.mxu0 0.0
      %908 = vmatprep.subr.mxu0 0.0
      %909 = vmatpush1.msra.mxu0 0.0
      %910 = vmatprep.subr.mxu0 0.0
      %911 = vmatpush1.msra.mxu0 0.0
      %912 = vmatprep.subr.mxu0 0.0
      %913 = vmatpush1.msra.mxu0 0.0
      %914 = vmatprep.subr.mxu0 0.0
      %915 = vmatpush1.msra.mxu0 0.0
      %916 = vmatprep.subr.mxu0 0.0
      %917 = vmatpush1.msra.mxu0 0.0
      %918 = vmatprep.subr.mxu0 0.0
      %919 = vmatpush1.msra.mxu0 0.0
      %920 = vmatprep.subr.mxu0 0.0
      %921 = vmatpush1.msra.mxu0 0.0
      %922 = vmatprep.subr.mxu0 0.0
      %923 = vmatpush1.msra.mxu0 0.0
      %924 = vmatprep.subr.mxu0 0.0
      %925 = vmatpush1.msra.mxu0 0.0
      %926 = vmatprep.subr.mxu0 0.0
      %927 = vmatpush1.msra.mxu0 0.0
      %928 = vmatprep.mubr.f32.mxu0 0.0
      %929 = vmatmul.mubr.f32.gmra.mrb[0].mxu0 %v380
      %v930 = vpop.f32.mrb[0].mxu0
      %v931 = vadd.f32 0.5, %v930
      %v932 = vpop.f32.mrb[0].mxu0
      %933 = vmatprep.mubr.f32.mxu0 0.0
      %934 = vmatmul.mubr.f32.gmra.mrb[0].mxu0 %v383
      %v935 = vpop.f32.mrb[0].mxu0
      %v936 = vadd.f32 0.5, %v935
      %v937 = vpop.f32.mrb[0].mxu0
      %938 = vmatprep.mubr.f32.mxu0 0.0
      %939 = vmatmul.mubr.f32.gmra.mrb[0].mxu0 %v386
      %v940 = vpop.f32.mrb[0].mxu0
      %v941 = vadd.f32 0.5, %v940
      %v942 = vpop.f32.mrb[0].mxu0
      %943 = vmatprep.mubr.f32.mxu0 0.0
      %944 = vmatmul.mubr.f32.gmra.mrb[0].mxu0 %v389
      %v945 = vpop.f32.mrb[0].mxu0
      %v946 = vadd.f32 0.5, %v945
      %v947 = vpop.f32.mrb[0].mxu0
      %948 = vmatprep.mubr.f32.mxu0 0.0
      %949 = vmatmul.mubr.f32.gmra.mrb[0].mxu0 %v392
      %v950 = vpop.f32.mrb[0].mxu0
      %v951 = vadd.f32 0.5, %v950
      %v952 = vpop.f32.mrb[0].mxu0
      %953 = vmatprep.mubr.f32.mxu0 0.0
      %954 = vmatmul.mubr.f32.gmra.mrb[0].mxu0 %v395
      %v955 = vpop.f32.mrb[0].mxu0
      %v956 = vadd.f32 0.5, %v955
      %v957 = vpop.f32.mrb[0].mxu0
      %958 = vdwg.mxu0
      %v959 = vmul.f32 %v931, 255.0
      %v960 = vmul.f32 %v936, 255.0
      %v961 = vmul.f32 %v941, 255.0
      %v962 = vmul.f32 %v946, 255.0
      %v963 = vmul.f32 %v951, 255.0
      %v964 = vmul.f32 %v956, 255.0
      %v965 = vsub.f32 %v959, 0.5
      %v966 = vsub.f32 %v960, 0.5
      %v967 = vsub.f32 %v961, 0.5
      %v968 = vsub.f32 %v962, 0.5
      %v969 = vsub.f32 %v963, 0.5
      %v970 = vsub.f32 %v964, 0.5
      %s971 = scalar_lea.vmem %s248, 96
      %972 = vst.msk [vmem:[%s971] sm:$0xff] %vm264, %v965
      %973 = vst.msk [vmem:[%s971 + $0x8] sm:$0xff] %vm264, %v966
      %974 = vst.msk [vmem:[%s971 + $0x10] sm:$0xff] %vm264, %v967
      %975 = vst.msk [vmem:[%s971 + $0x18] sm:$0xff] %vm264, %v968
      %976 = vst.msk [vmem:[%s971 + $0x20] sm:$0xff] %vm264, %v969
      %977 = vst.msk [vmem:[%s971 + $0x28] sm:$0xff] %vm264, %v970
      %s978 = smul.u32 18, %s19
      %p979 = scmp.lt.s32.totalorder %s18, 1
      %s980 = scalar_select %p979, %s18, 1
      %p981 = scmp.lt.s32.totalorder %s978, 17
      %s982 = scalar_select %p981, %s978, 17
      %s983 = smul.addr %s980, 18
      %s984 = sadd.s32 %s982, %s983
      %s985 = smul.addr %s984, 8
      %s986 = scalar_lea.vmem %s3, %s985
      // Predicated region
      $region33: #{tpu_custom_call.1} parent=31 // pred_check
        %p987 = pneg %p126
      $region34: #{tpu_custom_call.1} parent=31 // pred_check_branch
        %989 = sbr.rel (%p987) target = $region36
      $region35: #{tpu_custom_call.1} parent=31 // pred_region
        %s990 = smul.u32 18, %s19
      $region36: #{tpu_custom_call.1} parent=31 // pred_fallthru
        _
    $region32: #{tpu_custom_call.1} parent=5 // pred_fallthru
      _
    %p991 = scmp.le.s32.totalorder 2, %s9
    // Predicated region
    $region37: #{tpu_custom_call.1} parent=5 // pred_check
      %p992 = pneg %p991
    $region38: #{tpu_custom_call.1} parent=5 // pred_check_branch
      %994 = sbr.rel (%p992) target = $region40
    $region39: #{tpu_custom_call.1} parent=5 // pred_region
      %s995 = ssub.s32 %s9, 2
      // Predicated region
      $region41: #{tpu_custom_call.1} parent=39 // pred_check
        %p996 = pneg %p132
      $region42: #{tpu_custom_call.1} parent=39 // pred_check_branch
        %998 = sbr.rel (%p996) target = $region44
      $region43: #{tpu_custom_call.1} parent=39 // pred_region
        %s999 = smul.u32 18, %s21
        %p1000 = scmp.lt.s32.totalorder %s20, 1
        %s1001 = scalar_select %p1000, %s20, 1
        %p1002 = scmp.lt.s32.totalorder %s999, 17
        %s1003 = scalar_select %p1002, %s999, 17
        %s1004 = smul.addr %s1001, 18
        %s1005 = sadd.s32 %s1003, %s1004
        %s1006 = smul.addr %s1005, 8
        %s1007 = scalar_lea.vmem %s3, %s1006
      $region44: #{tpu_custom_call.1} parent=39 // pred_fallthru
        _
    $region40: #{tpu_custom_call.1} parent=5 // pred_fallthru
      _
  $region6: #{tpu_custom_call.1} parent=0 // loop_footer
    %s13 = sadd.s32 1, %s9
  $region7: #{tpu_custom_call.1} parent=0 // loop_footer_branch
    %8 = sbr.rel target = $region3
  $region8: #{tpu_custom_call.1} parent=0 // loop_exit
    _

</llo_original>
